<compile_context>
chip_gen: v6e
topology: v6e:2x2x1
jax: 0.10.0
libtpu: 0.0.40
codegen_flags: <defaults>
</compile_context>

<pallas_src>
import functools

import jax
import jax.numpy as jnp
from jax.experimental import pallas as pl
from jax.experimental.pallas import tpu as pltpu


def _round_up(x, m):
    return (x + m - 1) // m * m


# ----------------------------- Pallas kernel ------------------------------ #

def _make_conv_tile_kernel(offsets, cin, k_rows, k_pad, tl):
    """Per-(batch, lane-tile) fused im2col + big-K matmul kernel.

    Refs (batch dim squeezed by the BlockSpec):
      x0_ref : (Cin, TL)      bf16  lane-aligned chunk starting at j*TL
      x1_ref : (Cin, TL)      bf16  next lane-aligned chunk (halo for taps)
      w_ref  : (Cout, K_pad)  bf16  weight slab, rows tap-major / cin-minor
      b_ref  : (Cout, 1)      f32   bias
      o_ref  : (Cout, TL)     f32   output tile (lane-dense)
      p_ref  : (K_pad, TL)    bf16  scratch: in-VMEM im2col patches
    """

    def kernel(x0_ref, x1_ref, w_ref, b_ref, o_ref, p_ref):
        # One aligned load of tile + halo; every tap window is a static
        # vreg-level lane shift of this resident value (XLU slot), not a
        # misaligned VMEM ref slice.
        chunk = jnp.concatenate([x0_ref[...], x1_ref[...]], axis=1)  # (Cin, 2TL)
        for t, off in enumerate(offsets):          # static, unrolled tap loop
            p_ref[t * cin:(t + 1) * cin, :] = chunk[:, off:off + tl]
        if k_pad > k_rows:                         # keep padded K rows at 0.0
            p_ref[k_rows:, :] = jnp.zeros((k_pad - k_rows, tl), jnp.bfloat16)
        # Single big-K MXU matmul (K = n_taps*Cin) + fused bias add.
        o_ref[...] = (jnp.dot(w_ref[...], p_ref[...],
                              preferred_element_type=jnp.float32)
                      + b_ref[...])

    return kernel


# --------------------------- SamePadConv3d glue ---------------------------- #

def same_pad_conv3d(x_ncdhw, weight, bias, *, stride=(1, 1, 1), lane_tile=512):
    """Forward pass of SamePadConv3d.

    x_ncdhw : (N, Cin, D, H, W)  float32
    weight  : (Cout, Cin, kD, kH, kW) float32
    bias    : (Cout,) float32
    Returns : (N, Cout, Do, Ho, Wo) float32
    """
    N, Cin, D, H, W = x_ncdhw.shape
    Cout, Cin_w, kD, kH, kW = weight.shape
    assert Cin == Cin_w
    sD, sH, sW = stride

    # replicate "same" padding, clamped to >= 0 (matches PyTorch F.pad order)
    def pad_amt(k, s):
        p = max(k - s, 0)
        return (p // 2 + p % 2, p // 2)

    pd, ph, pw = pad_amt(kD, sD), pad_amt(kH, sH), pad_amt(kW, sW)
    x_pad = jnp.pad(x_ncdhw, ((0, 0), (0, 0), pd, ph, pw), mode="edge")
    Dp, Hp, Wp = x_pad.shape[2], x_pad.shape[3], x_pad.shape[4]

    # stride-1 output extents (kernel computes stride-1; striding = subsample)
    Do1, Ho1, Wo1 = Dp - kD + 1, Hp - kH + 1, Wp - kW + 1
    Do = (Dp - kD) // sD + 1
    Ho = (Hp - kH) // sH + 1
    Wo = (Wp - kW) // sW + 1

    S = Dp * Hp * Wp
    max_off = (kD - 1) * Hp * Wp + (kH - 1) * Wp + (kW - 1)

    # Lane tile: multiple of 128 and >= max tap offset so the single halo
    # chunk (the next 128-aligned block) covers every shifted window.
    TL = _round_up(max(lane_tile, max_off + 1), 128)
    num_tiles = -(-S // TL)
    L_out = num_tiles * TL
    L_in = L_out + TL          # one extra tile so the halo block always exists

    # Flatten + zero-extend + cast (fused by XLA into one pass over the input).
    x_flat = x_pad.reshape(N, Cin, S).astype(jnp.bfloat16)
    x_ext = jnp.pad(x_flat, ((0, 0), (0, 0), (0, L_in - S)))

    n_taps = kD * kH * kW
    offsets = [kd * Hp * Wp + kh * Wp + kw
               for kd in range(kD) for kh in range(kH) for kw in range(kW)]
    K = n_taps * Cin
    K_pad = _round_up(K, 128)

    # (Cout, Cin, kD, kH, kW) -> (Cout, kD, kH, kW, Cin) -> (Cout, K) slab;
    # row index = tap*Cin + cin matches the scratch layout; zero-pad to K_pad.
    w_slab = jnp.transpose(weight, (0, 2, 3, 4, 1)).reshape(Cout, K)
    w_slab = jnp.pad(w_slab, ((0, 0), (0, K_pad - K))).astype(jnp.bfloat16)
    bias2d = bias.reshape(Cout, 1).astype(jnp.float32)

    # Per-step VMEM (double-buffered inputs/outputs + single im2col scratch).
    vmem_bytes = (2 * 2 * Cin * TL * 2 + 2 * Cout * K_pad * 2 + 2 * Cout * 4
                  + 2 * Cout * TL * 4 + K_pad * TL * 2)
    assert vmem_bytes < 24 * 1024 * 1024, (
        "per-step VMEM too large; lower lane_tile or set vmem_limit_bytes")

    kernel = _make_conv_tile_kernel(offsets, Cin, K, K_pad, TL)

    out_flat = pl.pallas_call(
        kernel,
        out_shape=jax.ShapeDtypeStruct((N, Cout, L_out), jnp.float32),
        grid_spec=pltpu.PrefetchScalarGridSpec(
            num_scalar_prefetch=0,
            grid=(N, num_tiles),
            in_specs=[
                pl.BlockSpec((None, Cin, TL), lambda n, j: (n, 0, j)),      # tile
                pl.BlockSpec((None, Cin, TL), lambda n, j: (n, 0, j + 1)),  # halo
                pl.BlockSpec((Cout, K_pad), lambda n, j: (0, 0)),           # weights
                pl.BlockSpec((Cout, 1), lambda n, j: (0, 0)),               # bias
            ],
            out_specs=pl.BlockSpec((None, Cout, TL), lambda n, j: (n, 0, j)),
            scratch_shapes=[pltpu.VMEM((K_pad, TL), jnp.bfloat16)],
        ),
        compiler_params=pltpu.CompilerParams(
            dimension_semantics=("parallel", "parallel")),
    )(x_ext, x_ext, w_slab, bias2d)

    # Valid padded-grid positions (already channel-major: no transposes), then
    # exact subsampling for stride.
    out = out_flat[:, :, :S].reshape(N, Cout, Dp, Hp, Wp)
    out = out[:, :, :Do1, :Ho1, :Wo1]
    out = out[:, :, ::sD, ::sH, ::sW][:, :, :Do, :Ho, :Wo]
    return out


# --------------------------------- main ------------------------------------ #

if __name__ == "__main__":
    key = jax.random.PRNGKey(0)
    k_x, k_w, k_b = jax.random.split(key, 3)

    # SamePadConv3d(in_channels=4, out_channels=8, kernel_size=3, stride=1)
    Cin, Cout, ksz, stride = 4, 8, 3, 1
    N, D, H, W = 2, 8, 8, 8

    x = jax.random.normal(k_x, (N, Cin, D, H, W), dtype=jnp.float32)

    fan_in = Cin * ksz ** 3
    bound = 1.0 / (fan_in ** 0.5)
    weight = jax.random.uniform(k_w, (Cout, Cin, ksz, ksz, ksz),
                                minval=-bound, maxval=bound, dtype=jnp.float32)
    bias = jax.random.uniform(k_b, (Cout,), minval=-bound, maxval=bound,
                              dtype=jnp.float32)

    fwd = jax.jit(functools.partial(same_pad_conv3d, stride=(stride,) * 3))
    out = jax.block_until_ready(fwd(x, weight, bias))

    # Reference: XLA conv on the replicate-padded input.
    def ref_conv(xq, wq, b, s, k):
        p = max(k - s, 0)
        lo, hi = p // 2 + p % 2, p // 2
        xp = jnp.pad(xq, ((0, 0), (0, 0), (lo, hi), (lo, hi), (lo, hi)),
                     mode="edge")
        y = jax.lax.conv_general_dilated(
            xp, wq, window_strides=(s,) * 3, padding="VALID",
            dimension_numbers=("NCDHW", "OIDHW", "NCDHW"),
            preferred_element_type=jnp.float32)
        return y + b.reshape(1, -1, 1, 1, 1)

    # 1) tight check vs. a reference using identically bf16-quantized inputs
    #    with f32 accumulation (same numerics as the kernel).
    ref_bf16 = ref_conv(x.astype(jnp.bfloat16), weight.astype(jnp.bfloat16),
                        bias, stride, ksz)
    assert out.shape == ref_bf16.shape, (out.shape, ref_bf16.shape)
    assert jnp.allclose(out, ref_bf16, atol=1e-4, rtol=1e-4), \
        float(jnp.max(jnp.abs(out - ref_bf16)))

    # 2) loose check vs. the full-f32 reference (covers bf16 input quantization).
    ref_f32 = ref_conv(x, weight, bias, stride, ksz)
    assert jnp.allclose(out, ref_f32, atol=5e-2, rtol=5e-2)

    print("KERNEL_OK")
</pallas_src>

<mosaic_0001>
module attributes {stable_mosaic.version = 11 : i64} {
  func.func @kernel(%arg0: i32, %arg1: i32, %arg2: memref<1x4x512xbf16, #tpu.memory_space<vmem>>, %arg3: memref<1x4x512xbf16, #tpu.memory_space<vmem>>, %arg4: memref<8x128xbf16, #tpu.memory_space<vmem>>, %arg5: memref<8x1xf32, #tpu.memory_space<vmem>>, %arg6: memref<1x8x512xf32, #tpu.memory_space<vmem>>, %arg7: memref<128x512xbf16, #tpu.memory_space<vmem>>) attributes {dimension_semantics = [#tpu.dimension_semantics<parallel>, #tpu.dimension_semantics<parallel>], iteration_bounds = array<i64: 2, 2>, scalar_prefetch = 0 : i64, scratch_operands = 1 : i64, tpu.core_type = #tpu.core_type<tc>, window_params = [{transform_indices = @transform_0, window_bounds = array<i64: 1, 4, 512>}, {transform_indices = @transform_1, window_bounds = array<i64: 1, 4, 512>}, {pipeline_mode = #tpu.pipeline_mode<synchronous>, transform_indices = @transform_2, window_bounds = array<i64: 8, 128>}, {pipeline_mode = #tpu.pipeline_mode<synchronous>, transform_indices = @transform_3, window_bounds = array<i64: 8, 1>}, {transform_indices = @transform_4, window_bounds = array<i64: 1, 8, 512>}]} {
    %c0 = arith.constant 0 : index
    %c0_0 = arith.constant 0 : index
    %c0_1 = arith.constant 0 : index
    %0 = vector.load %arg2[%c0, %c0_0, %c0_1] : memref<1x4x512xbf16, #tpu.memory_space<vmem>>, vector<1x4x512xbf16>
    %1 = vector.shape_cast %0 : vector<1x4x512xbf16> to vector<4x512xbf16>
    %c0_2 = arith.constant 0 : index
    %c0_3 = arith.constant 0 : index
    %c0_4 = arith.constant 0 : index
    %2 = vector.load %arg3[%c0_2, %c0_3, %c0_4] : memref<1x4x512xbf16, #tpu.memory_space<vmem>>, vector<1x4x512xbf16>
    %3 = vector.shape_cast %2 : vector<1x4x512xbf16> to vector<4x512xbf16>
    %4 = tpu.concatenate %1, %3 in 1 : vector<4x512xbf16>, vector<4x512xbf16> -> vector<4x1024xbf16>
    %5 = vector.extract_strided_slice %4 {offsets = [0, 0], sizes = [4, 512], strides = [1, 1]} : vector<4x1024xbf16> to vector<4x512xbf16>
    %c0_5 = arith.constant 0 : index
    %c0_6 = arith.constant 0 : index
    %6 = vector.load %arg7[%c0_5, %c0_6] : memref<128x512xbf16, #tpu.memory_space<vmem>>, vector<4x512xbf16>
    tpu.vector_store %arg7[%c0_5, %c0_6], %5 {strides = array<i32>} : memref<128x512xbf16, #tpu.memory_space<vmem>>, vector<4x512xbf16>,
    %7 = vector.extract_strided_slice %4 {offsets = [0, 1], sizes = [4, 512], strides = [1, 1]} : vector<4x1024xbf16> to vector<4x512xbf16>
    %c4 = arith.constant 4 : index
    %c0_7 = arith.constant 0 : index
    %8 = vector.load %arg7[%c4, %c0_7] : memref<128x512xbf16, #tpu.memory_space<vmem>>, vector<4x512xbf16>
    tpu.vector_store %arg7[%c4, %c0_7], %7 {strides = array<i32>} : memref<128x512xbf16, #tpu.memory_space<vmem>>, vector<4x512xbf16>,
    %9 = vector.extract_strided_slice %4 {offsets = [0, 2], sizes = [4, 512], strides = [1, 1]} : vector<4x1024xbf16> to vector<4x512xbf16>
    %c8 = arith.constant 8 : index
    %c0_8 = arith.constant 0 : index
    %10 = vector.load %arg7[%c8, %c0_8] : memref<128x512xbf16, #tpu.memory_space<vmem>>, vector<4x512xbf16>
    tpu.vector_store %arg7[%c8, %c0_8], %9 {strides = array<i32>} : memref<128x512xbf16, #tpu.memory_space<vmem>>, vector<4x512xbf16>,
    %11 = vector.extract_strided_slice %4 {offsets = [0, 10], sizes = [4, 512], strides = [1, 1]} : vector<4x1024xbf16> to vector<4x512xbf16>
    %c12 = arith.constant 12 : index
    %c0_9 = arith.constant 0 : index
    %12 = vector.load %arg7[%c12, %c0_9] : memref<128x512xbf16, #tpu.memory_space<vmem>>, vector<4x512xbf16>
    tpu.vector_store %arg7[%c12, %c0_9], %11 {strides = array<i32>} : memref<128x512xbf16, #tpu.memory_space<vmem>>, vector<4x512xbf16>,
    %13 = vector.extract_strided_slice %4 {offsets = [0, 11], sizes = [4, 512], strides = [1, 1]} : vector<4x1024xbf16> to vector<4x512xbf16>
    %c16 = arith.constant 16 : index
    %c0_10 = arith.constant 0 : index
    %14 = vector.load %arg7[%c16, %c0_10] : memref<128x512xbf16, #tpu.memory_space<vmem>>, vector<4x512xbf16>
    tpu.vector_store %arg7[%c16, %c0_10], %13 {strides = array<i32>} : memref<128x512xbf16, #tpu.memory_space<vmem>>, vector<4x512xbf16>,
    %15 = vector.extract_strided_slice %4 {offsets = [0, 12], sizes = [4, 512], strides = [1, 1]} : vector<4x1024xbf16> to vector<4x512xbf16>
    %c20 = arith.constant 20 : index
    %c0_11 = arith.constant 0 : index
    %16 = vector.load %arg7[%c20, %c0_11] : memref<128x512xbf16, #tpu.memory_space<vmem>>, vector<4x512xbf16>
    tpu.vector_store %arg7[%c20, %c0_11], %15 {strides = array<i32>} : memref<128x512xbf16, #tpu.memory_space<vmem>>, vector<4x512xbf16>,
    %17 = vector.extract_strided_slice %4 {offsets = [0, 20], sizes = [4, 512], strides = [1, 1]} : vector<4x1024xbf16> to vector<4x512xbf16>
    %c24 = arith.constant 24 : index
    %c0_12 = arith.constant 0 : index
    %18 = vector.load %arg7[%c24, %c0_12] : memref<128x512xbf16, #tpu.memory_space<vmem>>, vector<4x512xbf16>
    tpu.vector_store %arg7[%c24, %c0_12], %17 {strides = array<i32>} : memref<128x512xbf16, #tpu.memory_space<vmem>>, vector<4x512xbf16>,
    %19 = vector.extract_strided_slice %4 {offsets = [0, 21], sizes = [4, 512], strides = [1, 1]} : vector<4x1024xbf16> to vector<4x512xbf16>
    %c28 = arith.constant 28 : index
    %c0_13 = arith.constant 0 : index
    %20 = vector.load %arg7[%c28, %c0_13] : memref<128x512xbf16, #tpu.memory_space<vmem>>, vector<4x512xbf16>
    tpu.vector_store %arg7[%c28, %c0_13], %19 {strides = array<i32>} : memref<128x512xbf16, #tpu.memory_space<vmem>>, vector<4x512xbf16>,
    %21 = vector.extract_strided_slice %4 {offsets = [0, 22], sizes = [4, 512], strides = [1, 1]} : vector<4x1024xbf16> to vector<4x512xbf16>
    %c32 = arith.constant 32 : index
    %c0_14 = arith.constant 0 : index
    %22 = vector.load %arg7[%c32, %c0_14] : memref<128x512xbf16, #tpu.memory_space<vmem>>, vector<4x512xbf16>
    tpu.vector_store %arg7[%c32, %c0_14], %21 {strides = array<i32>} : memref<128x512xbf16, #tpu.memory_space<vmem>>, vector<4x512xbf16>,
    %23 = vector.extract_strided_slice %4 {offsets = [0, 100], sizes = [4, 512], strides = [1, 1]} : vector<4x1024xbf16> to vector<4x512xbf16>
    %c36 = arith.constant 36 : index
    %c0_15 = arith.constant 0 : index
    %24 = vector.load %arg7[%c36, %c0_15] : memref<128x512xbf16, #tpu.memory_space<vmem>>, vector<4x512xbf16>
    tpu.vector_store %arg7[%c36, %c0_15], %23 {strides = array<i32>} : memref<128x512xbf16, #tpu.memory_space<vmem>>, vector<4x512xbf16>,
    %25 = vector.extract_strided_slice %4 {offsets = [0, 101], sizes = [4, 512], strides = [1, 1]} : vector<4x1024xbf16> to vector<4x512xbf16>
    %c40 = arith.constant 40 : index
    %c0_16 = arith.constant 0 : index
    %26 = vector.load %arg7[%c40, %c0_16] : memref<128x512xbf16, #tpu.memory_space<vmem>>, vector<4x512xbf16>
    tpu.vector_store %arg7[%c40, %c0_16], %25 {strides = array<i32>} : memref<128x512xbf16, #tpu.memory_space<vmem>>, vector<4x512xbf16>,
    %27 = vector.extract_strided_slice %4 {offsets = [0, 102], sizes = [4, 512], strides = [1, 1]} : vector<4x1024xbf16> to vector<4x512xbf16>
    %c44 = arith.constant 44 : index
    %c0_17 = arith.constant 0 : index
    %28 = vector.load %arg7[%c44, %c0_17] : memref<128x512xbf16, #tpu.memory_space<vmem>>, vector<4x512xbf16>
    tpu.vector_store %arg7[%c44, %c0_17], %27 {strides = array<i32>} : memref<128x512xbf16, #tpu.memory_space<vmem>>, vector<4x512xbf16>,
    %29 = vector.extract_strided_slice %4 {offsets = [0, 110], sizes = [4, 512], strides = [1, 1]} : vector<4x1024xbf16> to vector<4x512xbf16>
    %c48 = arith.constant 48 : index
    %c0_18 = arith.constant 0 : index
    %30 = vector.load %arg7[%c48, %c0_18] : memref<128x512xbf16, #tpu.memory_space<vmem>>, vector<4x512xbf16>
    tpu.vector_store %arg7[%c48, %c0_18], %29 {strides = array<i32>} : memref<128x512xbf16, #tpu.memory_space<vmem>>, vector<4x512xbf16>,
    %31 = vector.extract_strided_slice %4 {offsets = [0, 111], sizes = [4, 512], strides = [1, 1]} : vector<4x1024xbf16> to vector<4x512xbf16>
    %c52 = arith.constant 52 : index
    %c0_19 = arith.constant 0 : index
    %32 = vector.load %arg7[%c52, %c0_19] : memref<128x512xbf16, #tpu.memory_space<vmem>>, vector<4x512xbf16>
    tpu.vector_store %arg7[%c52, %c0_19], %31 {strides = array<i32>} : memref<128x512xbf16, #tpu.memory_space<vmem>>, vector<4x512xbf16>,
    %33 = vector.extract_strided_slice %4 {offsets = [0, 112], sizes = [4, 512], strides = [1, 1]} : vector<4x1024xbf16> to vector<4x512xbf16>
    %c56 = arith.constant 56 : index
    %c0_20 = arith.constant 0 : index
    %34 = vector.load %arg7[%c56, %c0_20] : memref<128x512xbf16, #tpu.memory_space<vmem>>, vector<4x512xbf16>
    tpu.vector_store %arg7[%c56, %c0_20], %33 {strides = array<i32>} : memref<128x512xbf16, #tpu.memory_space<vmem>>, vector<4x512xbf16>,
    %35 = vector.extract_strided_slice %4 {offsets = [0, 120], sizes = [4, 512], strides = [1, 1]} : vector<4x1024xbf16> to vector<4x512xbf16>
    %c60 = arith.constant 60 : index
    %c0_21 = arith.constant 0 : index
    %36 = vector.load %arg7[%c60, %c0_21] : memref<128x512xbf16, #tpu.memory_space<vmem>>, vector<4x512xbf16>
    tpu.vector_store %arg7[%c60, %c0_21], %35 {strides = array<i32>} : memref<128x512xbf16, #tpu.memory_space<vmem>>, vector<4x512xbf16>,
    %37 = vector.extract_strided_slice %4 {offsets = [0, 121], sizes = [4, 512], strides = [1, 1]} : vector<4x1024xbf16> to vector<4x512xbf16>
    %c64 = arith.constant 64 : index
    %c0_22 = arith.constant 0 : index
    %38 = vector.load %arg7[%c64, %c0_22] : memref<128x512xbf16, #tpu.memory_space<vmem>>, vector<4x512xbf16>
    tpu.vector_store %arg7[%c64, %c0_22], %37 {strides = array<i32>} : memref<128x512xbf16, #tpu.memory_space<vmem>>, vector<4x512xbf16>,
    %39 = vector.extract_strided_slice %4 {offsets = [0, 122], sizes = [4, 512], strides = [1, 1]} : vector<4x1024xbf16> to vector<4x512xbf16>
    %c68 = arith.constant 68 : index
    %c0_23 = arith.constant 0 : index
    %40 = vector.load %arg7[%c68, %c0_23] : memref<128x512xbf16, #tpu.memory_space<vmem>>, vector<4x512xbf16>
    tpu.vector_store %arg7[%c68, %c0_23], %39 {strides = array<i32>} : memref<128x512xbf16, #tpu.memory_space<vmem>>, vector<4x512xbf16>,
    %41 = vector.extract_strided_slice %4 {offsets = [0, 200], sizes = [4, 512], strides = [1, 1]} : vector<4x1024xbf16> to vector<4x512xbf16>
    %c72 = arith.constant 72 : index
    %c0_24 = arith.constant 0 : index
    %42 = vector.load %arg7[%c72, %c0_24] : memref<128x512xbf16, #tpu.memory_space<vmem>>, vector<4x512xbf16>
    tpu.vector_store %arg7[%c72, %c0_24], %41 {strides = array<i32>} : memref<128x512xbf16, #tpu.memory_space<vmem>>, vector<4x512xbf16>,
    %43 = vector.extract_strided_slice %4 {offsets = [0, 201], sizes = [4, 512], strides = [1, 1]} : vector<4x1024xbf16> to vector<4x512xbf16>
    %c76 = arith.constant 76 : index
    %c0_25 = arith.constant 0 : index
    %44 = vector.load %arg7[%c76, %c0_25] : memref<128x512xbf16, #tpu.memory_space<vmem>>, vector<4x512xbf16>
    tpu.vector_store %arg7[%c76, %c0_25], %43 {strides = array<i32>} : memref<128x512xbf16, #tpu.memory_space<vmem>>, vector<4x512xbf16>,
    %45 = vector.extract_strided_slice %4 {offsets = [0, 202], sizes = [4, 512], strides = [1, 1]} : vector<4x1024xbf16> to vector<4x512xbf16>
    %c80 = arith.constant 80 : index
    %c0_26 = arith.constant 0 : index
    %46 = vector.load %arg7[%c80, %c0_26] : memref<128x512xbf16, #tpu.memory_space<vmem>>, vector<4x512xbf16>
    tpu.vector_store %arg7[%c80, %c0_26], %45 {strides = array<i32>} : memref<128x512xbf16, #tpu.memory_space<vmem>>, vector<4x512xbf16>,
    %47 = vector.extract_strided_slice %4 {offsets = [0, 210], sizes = [4, 512], strides = [1, 1]} : vector<4x1024xbf16> to vector<4x512xbf16>
    %c84 = arith.constant 84 : index
    %c0_27 = arith.constant 0 : index
    %48 = vector.load %arg7[%c84, %c0_27] : memref<128x512xbf16, #tpu.memory_space<vmem>>, vector<4x512xbf16>
    tpu.vector_store %arg7[%c84, %c0_27], %47 {strides = array<i32>} : memref<128x512xbf16, #tpu.memory_space<vmem>>, vector<4x512xbf16>,
    %49 = vector.extract_strided_slice %4 {offsets = [0, 211], sizes = [4, 512], strides = [1, 1]} : vector<4x1024xbf16> to vector<4x512xbf16>
    %c88 = arith.constant 88 : index
    %c0_28 = arith.constant 0 : index
    %50 = vector.load %arg7[%c88, %c0_28] : memref<128x512xbf16, #tpu.memory_space<vmem>>, vector<4x512xbf16>
    tpu.vector_store %arg7[%c88, %c0_28], %49 {strides = array<i32>} : memref<128x512xbf16, #tpu.memory_space<vmem>>, vector<4x512xbf16>,
    %51 = vector.extract_strided_slice %4 {offsets = [0, 212], sizes = [4, 512], strides = [1, 1]} : vector<4x1024xbf16> to vector<4x512xbf16>
    %c92 = arith.constant 92 : index
    %c0_29 = arith.constant 0 : index
    %52 = vector.load %arg7[%c92, %c0_29] : memref<128x512xbf16, #tpu.memory_space<vmem>>, vector<4x512xbf16>
    tpu.vector_store %arg7[%c92, %c0_29], %51 {strides = array<i32>} : memref<128x512xbf16, #tpu.memory_space<vmem>>, vector<4x512xbf16>,
    %53 = vector.extract_strided_slice %4 {offsets = [0, 220], sizes = [4, 512], strides = [1, 1]} : vector<4x1024xbf16> to vector<4x512xbf16>
    %c96 = arith.constant 96 : index
    %c0_30 = arith.constant 0 : index
    %54 = vector.load %arg7[%c96, %c0_30] : memref<128x512xbf16, #tpu.memory_space<vmem>>, vector<4x512xbf16>
    tpu.vector_store %arg7[%c96, %c0_30], %53 {strides = array<i32>} : memref<128x512xbf16, #tpu.memory_space<vmem>>, vector<4x512xbf16>,
    %55 = vector.extract_strided_slice %4 {offsets = [0, 221], sizes = [4, 512], strides = [1, 1]} : vector<4x1024xbf16> to vector<4x512xbf16>
    %c100 = arith.constant 100 : index
    %c0_31 = arith.constant 0 : index
    %56 = vector.load %arg7[%c100, %c0_31] : memref<128x512xbf16, #tpu.memory_space<vmem>>, vector<4x512xbf16>
    tpu.vector_store %arg7[%c100, %c0_31], %55 {strides = array<i32>} : memref<128x512xbf16, #tpu.memory_space<vmem>>, vector<4x512xbf16>,
    %57 = vector.extract_strided_slice %4 {offsets = [0, 222], sizes = [4, 512], strides = [1, 1]} : vector<4x1024xbf16> to vector<4x512xbf16>
    %c104 = arith.constant 104 : index
    %c0_32 = arith.constant 0 : index
    %58 = vector.load %arg7[%c104, %c0_32] : memref<128x512xbf16, #tpu.memory_space<vmem>>, vector<4x512xbf16>
    tpu.vector_store %arg7[%c104, %c0_32], %57 {strides = array<i32>} : memref<128x512xbf16, #tpu.memory_space<vmem>>, vector<4x512xbf16>,
    %cst = arith.constant 0.000000e+00 : bf16
    %59 = vector.broadcast %cst : bf16 to vector<20x512xbf16>
    %c108 = arith.constant 108 : index
    %c0_33 = arith.constant 0 : index
    %60 = vector.load %arg7[%c108, %c0_33] : memref<128x512xbf16, #tpu.memory_space<vmem>>, vector<20x512xbf16>
    tpu.vector_store %arg7[%c108, %c0_33], %59 {strides = array<i32>} : memref<128x512xbf16, #tpu.memory_space<vmem>>, vector<20x512xbf16>,
    %c0_34 = arith.constant 0 : index
    %c0_35 = arith.constant 0 : index
    %61 = vector.load %arg4[%c0_34, %c0_35] : memref<8x128xbf16, #tpu.memory_space<vmem>>, vector<8x128xbf16>
    %c0_36 = arith.constant 0 : index
    %c0_37 = arith.constant 0 : index
    %62 = vector.load %arg7[%c0_36, %c0_37] : memref<128x512xbf16, #tpu.memory_space<vmem>>, vector<128x512xbf16>
    %cst_38 = arith.constant dense<0.000000e+00> : vector<8x512xf32>
    %63 = tpu.matmul %61, %62, %cst_38 {dimension_numbers = #tpu.dot_dimension_numbers<[1], [0], [0], [1], [0, 0, 1, 1], [], []>} : vector<8x128xbf16>, vector<128x512xbf16>, vector<8x512xf32> -> vector<8x512xf32>
    %c0_39 = arith.constant 0 : index
    %c0_40 = arith.constant 0 : index
    %64 = vector.load %arg5[%c0_39, %c0_40] : memref<8x1xf32, #tpu.memory_space<vmem>>, vector<8x1xf32>
    %65 = vector.broadcast %64 : vector<8x1xf32> to vector<8x512xf32>
    %66 = arith.addf %63, %65 : vector<8x512xf32>
    %c0_41 = arith.constant 0 : index
    %c0_42 = arith.constant 0 : index
    %c0_43 = arith.constant 0 : index
    %67 = vector.load %arg6[%c0_41, %c0_42, %c0_43] : memref<1x8x512xf32, #tpu.memory_space<vmem>>, vector<1x8x512xf32>
    %68 = vector.shape_cast %67 : vector<1x8x512xf32> to vector<8x512xf32>
    %69 = vector.shape_cast %66 : vector<8x512xf32> to vector<1x8x512xf32>
    tpu.vector_store %arg6[%c0_41, %c0_42, %c0_43], %69 {strides = array<i32>} : memref<1x8x512xf32, #tpu.memory_space<vmem>>, vector<1x8x512xf32>,
    return
  }
  func.func @transform_0(%arg0: i32, %arg1: i32) -> (i32, i32, i32) {
    %c0_i32 = arith.constant 0 : i32
    %c0_i32_0 = arith.constant 0 : i32
    return %arg0, %c0_i32, %arg1 : i32, i32, i32
  }
  func.func @transform_1(%arg0: i32, %arg1: i32) -> (i32, i32, i32) {
    %c1_i32 = arith.constant 1 : i32
    %0 = arith.addi %arg1, %c1_i32 : i32
    %c0_i32 = arith.constant 0 : i32
    %c0_i32_0 = arith.constant 0 : i32
    return %arg0, %c0_i32, %0 : i32, i32, i32
  }
  func.func @transform_2(%arg0: i32, %arg1: i32) -> (i32, i32) {
    %c0_i32 = arith.constant 0 : i32
    %c0_i32_0 = arith.constant 0 : i32
    %c0_i32_1 = arith.constant 0 : i32
    return %c0_i32, %c0_i32_0 : i32, i32
  }
  func.func @transform_3(%arg0: i32, %arg1: i32) -> (i32, i32) {
    %c0_i32 = arith.constant 0 : i32
    %c0_i32_0 = arith.constant 0 : i32
    %c0_i32_1 = arith.constant 0 : i32
    return %c0_i32, %c0_i32_0 : i32, i32
  }
  func.func @transform_4(%arg0: i32, %arg1: i32) -> (i32, i32, i32) {
    %c0_i32 = arith.constant 0 : i32
    %c0_i32_0 = arith.constant 0 : i32
    return %arg0, %c0_i32, %arg1 : i32, i32, i32
  }
}

</mosaic_0001>

<llo_original>
// kernel: same_pad_conv3d.1
$region0: #{same_pad_conv3d.1}
  #allocation0 [shape = 'u32[]', space=smem, size = 0x4, offset = 0x4, fixed_abs, tag = 'smem constant byte address 0x4 - core index']
  #allocation1 [shape = 'u32[144,128]{1,0:T(1,128)}', space=vmem, size = 0x12000, scoped, tag = 'internal scratch']
  #allocation2 [shape = 'bf16[128,512]{1,0:T(8,128)(2,1)}', space=vmem, size = 0x20000, scoped, tag = 'scratch operand']
  %s0 = inlined_call_operand.vmem [shape: bf16[2,4,1536], index: 0, kind: input, shape index: {}, may-alias: {0,1}]
  %s1 = inlined_call_operand.vmem [shape: bf16[2,4,1536], index: 1, kind: input, shape index: {}, may-alias: {0,1}]
  %s2 = inlined_call_operand.vmem [shape: bf16[8,128], index: 2, kind: input, shape index: {}]
  %s3 = inlined_call_operand.vmem [shape: f32[8,1], index: 3, kind: input, shape index: {}]
  %s4 = inlined_call_operand.vmem [shape: f32[2,8,1024], index: 4, kind: output, shape index: {}]
  %s5 = sld [smem:[#allocation0]]
  $region49: #{same_pad_conv3d.1} parent=0
    _
  %s7 = ssub.s32 1, %s5
  %s8 = scalar_select 0, %s7, %s5
  loop: start=0, step=1, limit=6
  $region2: #{same_pad_conv3d.1} parent=0 // loop_pre_header
    _
  $region3: #{same_pad_conv3d.1} parent=0 // loop_header
    %s10 = sphi 0, %s14
    %p11 = scmp.ge.s32.totalorder %s10, 6
    %s17 = sphi 0, %s29
    %s18 = sphi 0, %s25
    %s19 = sphi 0, %s17
    %s20 = sphi 0, %s18
    %s21 = sphi 0, %s19
    %s22 = sphi 0, %s20
    %s34 = sphi 0, %s36
    %s37 = sphi 0, %s34
    %s38 = sphi 0, %s37
    %s54 = sphi 0, %s38
    %s64 = sphi 0, %s66
    %s67 = sphi 0, %s64
    %s68 = sphi 0, %s67
    %s84 = sphi 0, %s68
    %s88 = sphi 0, %s88
    %s90 = sphi 0, %s88
    %s91 = sphi 0, %s90
    %s105 = sphi 0, %s91
    %s109 = sphi 0, %s109
    %s111 = sphi 0, %s109
    %s112 = sphi 0, %s111
    %s126 = sphi 0, %s112
    %s134 = sphi 0, %s136
    %s137 = sphi 0, %s134
    %s138 = sphi 0, %s137
    %s154 = sphi 0, %s138
  $region4: #{same_pad_conv3d.1} parent=0 // loop_header_branch
    %13 = sbr.rel (%p11) target = $region8
  $region5: #{same_pad_conv3d.1} parent=0 // loop_body
    %s15 = ssub.s32 %s10, 1
    %s16 = ssub.s32 %s10, 2
    %s23 = sadd.s32 1, %s18
    %p24 = scmp.ge.s32.totalorder %s23, 2
    %s25 = scalar_select %p24, 0, %s23
    %s26 = sadd.s32 1, %s17
    %s27 = scalar_select %p24, %s26, %s17
    %p28 = scmp.ge.s32.totalorder %s27, 2
    %s29 = scalar_select %p28, 0, %s27
    %s30 = ssub.s32 %s17, %s29
    %s31 = ssub.s32 %s18, %s25
    %s32 = sor.u32 %s30, %s31
    %p33 = scmp.eq.s32.totalorder %s32, 0
    %s35 = sadd.s32 %s34, 1
    %s36 = scalar_select %p33, %s34, %s35
    %p39 = pneg %p33
    %p40 = scmp.eq.s32.totalorder %s10, 3
    %p41 = por %p39, %p40
    %p42 = scmp.ne.s32.totalorder %s34, %s37
    %p43 = scmp.eq.s32.totalorder %s10, 0
    %p44 = por %p42, %p43
    %p45 = scmp.ne.s32.totalorder %s34, %s37
    %p46 = scmp.eq.s32.totalorder %s15, 3
    %p47 = por %p45, %p46
    %p48 = scmp.ne.s32.totalorder %s37, %s38
    %p49 = scmp.eq.s32.totalorder %s15, 0
    %p50 = por %p48, %p49
    %p51 = scmp.ne.s32.totalorder %s37, %s38
    %p52 = scmp.eq.s32.totalorder %s16, 3
    %p53 = por %p51, %p52
    %p55 = scmp.ne.s32.totalorder %s38, %s54
    %p56 = scmp.eq.s32.totalorder %s16, 0
    %p57 = por %p55, %p56
    %s58 = sadd.s32 %s18, 1
    %s59 = sadd.s32 %s25, 1
    %s60 = ssub.s32 %s17, %s29
    %s61 = ssub.s32 %s58, %s59
    %s62 = sor.u32 %s60, %s61
    %p63 = scmp.eq.s32.totalorder %s62, 0
    %s65 = sadd.s32 %s64, 1
    %s66 = scalar_select %p63, %s64, %s65
    %p69 = pneg %p63
    %p70 = scmp.eq.s32.totalorder %s10, 3
    %p71 = por %p69, %p70
    %p72 = scmp.ne.s32.totalorder %s64, %s67
    %p73 = scmp.eq.s32.totalorder %s10, 0
    %p74 = por %p72, %p73
    %p75 = scmp.ne.s32.totalorder %s64, %s67
    %p76 = scmp.eq.s32.totalorder %s15, 3
    %p77 = por %p75, %p76
    %p78 = scmp.ne.s32.totalorder %s67, %s68
    %p79 = scmp.eq.s32.totalorder %s15, 0
    %p80 = por %p78, %p79
    %p81 = scmp.ne.s32.totalorder %s67, %s68
    %p82 = scmp.eq.s32.totalorder %s16, 3
    %p83 = por %p81, %p82
    %p85 = scmp.ne.s32.totalorder %s68, %s84
    %p86 = scmp.eq.s32.totalorder %s16, 0
    %p87 = por %p85, %p86
    %s89 = sadd.s32 %s88, 1
    %p92 = scmp.eq.s32.totalorder %s10, 3
    %p93 = scmp.ne.s32.totalorder %s88, %s90
    %p94 = scmp.eq.s32.totalorder %s10, 0
    %p95 = por %p93, %p94
    %p96 = scmp.ne.s32.totalorder %s88, %s90
    %p97 = scmp.eq.s32.totalorder %s15, 3
    %p98 = por %p96, %p97
    %p99 = scmp.ne.s32.totalorder %s90, %s91
    %p100 = scmp.eq.s32.totalorder %s15, 0
    %p101 = por %p99, %p100
    %p102 = scmp.ne.s32.totalorder %s90, %s91
    %p103 = scmp.eq.s32.totalorder %s16, 3
    %p104 = por %p102, %p103
    %p106 = scmp.ne.s32.totalorder %s91, %s105
    %p107 = scmp.eq.s32.totalorder %s16, 0
    %p108 = por %p106, %p107
    %s110 = sadd.s32 %s109, 1
    %p113 = scmp.eq.s32.totalorder %s10, 3
    %p114 = scmp.ne.s32.totalorder %s109, %s111
    %p115 = scmp.eq.s32.totalorder %s10, 0
    %p116 = por %p114, %p115
    %p117 = scmp.ne.s32.totalorder %s109, %s111
    %p118 = scmp.eq.s32.totalorder %s15, 3
    %p119 = por %p117, %p118
    %p120 = scmp.ne.s32.totalorder %s111, %s112
    %p121 = scmp.eq.s32.totalorder %s15, 0
    %p122 = por %p120, %p121
    %p123 = scmp.ne.s32.totalorder %s111, %s112
    %p124 = scmp.eq.s32.totalorder %s16, 3
    %p125 = por %p123, %p124
    %p127 = scmp.ne.s32.totalorder %s112, %s126
    %p128 = scmp.eq.s32.totalorder %s16, 0
    %p129 = por %p127, %p128
    %s130 = ssub.s32 %s17, %s29
    %s131 = ssub.s32 %s18, %s25
    %s132 = sor.u32 %s130, %s131
    %p133 = scmp.eq.s32.totalorder %s132, 0
    %s135 = sadd.s32 %s134, 1
    %s136 = scalar_select %p133, %s134, %s135
    %p139 = pneg %p133
    %p140 = scmp.eq.s32.totalorder %s10, 3
    %p141 = por %p139, %p140
    %p142 = scmp.ne.s32.totalorder %s134, %s137
    %p143 = scmp.eq.s32.totalorder %s10, 0
    %p144 = por %p142, %p143
    %p145 = scmp.ne.s32.totalorder %s134, %s137
    %p146 = scmp.eq.s32.totalorder %s15, 3
    %p147 = por %p145, %p146
    %p148 = scmp.ne.s32.totalorder %s137, %s138
    %p149 = scmp.eq.s32.totalorder %s15, 0
    %p150 = por %p148, %p149
    %p151 = scmp.ne.s32.totalorder %s137, %s138
    %p152 = scmp.eq.s32.totalorder %s16, 3
    %p153 = por %p151, %p152
    %p155 = scmp.ne.s32.totalorder %s138, %s154
    %p156 = scmp.eq.s32.totalorder %s16, 0
    %p157 = por %p155, %p156
    %p158 = scmp.le.s32.totalorder 1, %s10
    %p159 = scmp.lt.s32.totalorder %s10, 5
    %p160 = pnand %p158, %p159
    %p161 = pneg %p160
    // Predicated region
    $region9: #{same_pad_conv3d.1} parent=5 // pred_check
      _
    $region10: #{same_pad_conv3d.1} parent=5 // pred_check_branch
      %163 = sbr.rel (%p160) target = $region12
    $region11: #{same_pad_conv3d.1} parent=5 // pred_region
      %s164 = ssub.s32 %s10, 1
      // Predicated region
      $region13: #{same_pad_conv3d.1} parent=11 // pred_check
        %p165 = pneg %p101
      $region14: #{same_pad_conv3d.1} parent=11 // pred_check_branch
        %167 = sbr.rel (%p165) target = $region16
      $region15: #{same_pad_conv3d.1} parent=11 // pred_region
        _
      $region16: #{same_pad_conv3d.1} parent=11 // pred_fallthru
        _
      // Predicated region
      $region17: #{same_pad_conv3d.1} parent=11 // pred_check
        %p168 = pneg %p122
      $region18: #{same_pad_conv3d.1} parent=11 // pred_check_branch
        %170 = sbr.rel (%p168) target = $region20
      $region19: #{same_pad_conv3d.1} parent=11 // pred_region
        _
      $region20: #{same_pad_conv3d.1} parent=11 // pred_fallthru
        _
    $region12: #{same_pad_conv3d.1} parent=5 // pred_fallthru
      _
    %p171 = scmp.lt.s32.totalorder %s10, 4
    // Predicated region
    $region21: #{same_pad_conv3d.1} parent=5 // pred_check
      %p172 = pneg %p171
    $region22: #{same_pad_conv3d.1} parent=5 // pred_check_branch
      %174 = sbr.rel (%p172) target = $region24
    $region23: #{same_pad_conv3d.1} parent=5 // pred_region
      // Predicated region
      $region25: #{same_pad_conv3d.1} parent=23 // pred_check
        %p175 = pneg %p44
      $region26: #{same_pad_conv3d.1} parent=23 // pred_check_branch
        %177 = sbr.rel (%p175) target = $region28
      $region27: #{same_pad_conv3d.1} parent=23 // pred_region
        %s178 = smul.u32 4, %s18
        %p179 = scmp.lt.s32.totalorder %s17, 1
        %s180 = scalar_select %p179, %s17, 1
        %p181 = scmp.lt.s32.totalorder %s178, 11
        %s182 = scalar_select %p181, %s178, 11
        %s183 = smul.addr %s180, 12
        %s184 = sadd.s32 %s182, %s183
        %s185 = smul.addr %s184, 2
        %s186 = scalar_lea.vmem %s0, %s185
        %s187 = smul.u32 4, %s18
      $region28: #{same_pad_conv3d.1} parent=23 // pred_fallthru
        _
      // Predicated region
      $region29: #{same_pad_conv3d.1} parent=23 // pred_check
        %p188 = pneg %p74
      $region30: #{same_pad_conv3d.1} parent=23 // pred_check_branch
        %190 = sbr.rel (%p188) target = $region32
      $region31: #{same_pad_conv3d.1} parent=23 // pred_region
        %s191 = sadd.s32 %s18, 1
        %s192 = smul.u32 4, %s191
        %p193 = scmp.lt.s32.totalorder %s17, 1
        %s194 = scalar_select %p193, %s17, 1
        %p195 = scmp.lt.s32.totalorder %s192, 11
        %s196 = scalar_select %p195, %s192, 11
        %s197 = smul.addr %s194, 12
        %s198 = sadd.s32 %s196, %s197
        %s199 = smul.addr %s198, 2
        %s200 = scalar_lea.vmem %s1, %s199
        %s201 = sadd.s32 %s18, 1
        %s202 = smul.u32 4, %s201
      $region32: #{same_pad_conv3d.1} parent=23 // pred_fallthru
        _
    $region24: #{same_pad_conv3d.1} parent=5 // pred_fallthru
      _
    %p203 = scmp.le.s32.totalorder 1, %s10
    %p204 = scmp.lt.s32.totalorder %s10, 5
    %p205 = pnand %p203, %p204
    %p206 = pneg %p205
    // Predicated region
    $region33: #{same_pad_conv3d.1} parent=5 // pred_check
      _
    $region34: #{same_pad_conv3d.1} parent=5 // pred_check_branch
      %208 = sbr.rel (%p205) target = $region36
    $region35: #{same_pad_conv3d.1} parent=5 // pred_region
      %s209 = ssub.s32 %s10, 1
      %s210 = smul.u32 4, %s20
      %p211 = scmp.lt.s32.totalorder %s19, 1
      %s212 = scalar_select %p211, %s19, 1
      %p213 = scmp.lt.s32.totalorder %s210, 11
      %s214 = scalar_select %p213, %s210, 11
      %s215 = smul.addr %s212, 12
      %s216 = sadd.s32 %s214, %s215
      %s217 = smul.addr %s216, 2
      %s218 = scalar_lea.vmem %s0, %s217
      %p219 = pneg %p50
      %p220 = pneg %p47
      %s221 = sadd.s32 %s20, 1
      %s222 = smul.u32 4, %s221
      %p223 = scmp.lt.s32.totalorder %s19, 1
      %s224 = scalar_select %p223, %s19, 1
      %p225 = scmp.lt.s32.totalorder %s222, 11
      %s226 = scalar_select %p225, %s222, 11
      %s227 = smul.addr %s224, 12
      %s228 = sadd.s32 %s226, %s227
      %s229 = smul.addr %s228, 2
      %s230 = scalar_lea.vmem %s1, %s229
      %p231 = pneg %p80
      %p232 = pneg %p77
      %p233 = pneg %p101
      %p234 = pneg %p98
      %p235 = pneg %p122
      %p236 = pneg %p119
      %p237 = pneg %p150
      %p238 = pneg %p147
      %s239 = smul.u32 4, %s20
      %p240 = scmp.lt.s32.totalorder %s19, 1
      %s241 = scalar_select %p240, %s19, 1
      %p242 = scmp.lt.s32.totalorder %s239, 7
      %s243 = scalar_select %p242, %s239, 7
      %s244 = smul.addr %s241, 8
      %s245 = sadd.s32 %s243, %s244
      %s246 = smul.addr %s245, 8
      %s247 = scalar_lea.vmem %s4, %s246
      %s248 = smul.u32 4, %s20
      %p249 = scmp.lt.s32.totalorder %s19, 1
      %s250 = scalar_select %p249, %s19, 1
      %p251 = scmp.lt.s32.totalorder %s248, 11
      %s252 = scalar_select %p251, %s248, 11
      %s253 = smul.addr %s250, 12
      %s254 = sadd.s32 %s252, %s253
      %s255 = smul.addr %s254, 2
      %s256 = scalar_lea.vmem %s0, %s255
      %s257 = smul.u32 4, %s20
      %s258 = sadd.s32 %s20, 1
      %s259 = smul.u32 4, %s258
      %p260 = scmp.lt.s32.totalorder %s19, 1
      %s261 = scalar_select %p260, %s19, 1
      %p262 = scmp.lt.s32.totalorder %s259, 11
      %s263 = scalar_select %p262, %s259, 11
      %s264 = smul.addr %s261, 12
      %s265 = sadd.s32 %s263, %s264
      %s266 = smul.addr %s265, 2
      %s267 = scalar_lea.vmem %s1, %s266
      %s268 = sadd.s32 %s20, 1
      %s269 = smul.u32 4, %s268
      %s270 = smul.u32 4, %s20
      %p271 = scmp.lt.s32.totalorder %s19, 1
      %s272 = scalar_select %p271, %s19, 1
      %p273 = scmp.lt.s32.totalorder %s270, 7
      %s274 = scalar_select %p273, %s270, 7
      %s275 = smul.addr %s272, 8
      %s276 = sadd.s32 %s274, %s275
      %s277 = smul.addr %s276, 8
      %s278 = scalar_lea.vmem %s4, %s277
      %s279 = smul.u32 4, %s20
      %v281 = vld [vmem:[%s256] sm:$0xff]
      %v282 = vld [vmem:[%s267] sm:$0xff]
      %v284 = vcombine.high %v281, %v281
      %v286 = vunpack.c.l.s4 1983009808
      %v287 = vunpack.c.0.s8 %v286
      %v288 = vlaneseq
      %v289 = vshrl.u32 %v288, 7
      %v290 = vsub.s32 %v287, %v289
      %v291 = vrot.slane %v281, %v290
      %v293 = vunpack.c.l.s4 1983009808
      %v294 = vunpack.c.0.s8 %v293
      %v295 = vlaneseq
      %v296 = vshrl.u32 %v295, 7
      %v297 = vsub.s32 %v294, %v296
      %v298 = vrot.slane %v284, %v297
      %v299 = vcombine.high %v291, %v291
      %v300 = vcombine.high %v298, %v298
      %v303 = vunpack.c.l.s4 1983009808
      %v304 = vunpack.c.0.s8 %v303
      %v305 = vlaneseq
      %v306 = vshrl.u32 %v305, 7
      %v307 = vsub.s32 %v304, %v306
      %v308 = vrot.slane %v282, %v307
      %v309 = vcombine.high %v308, %v308
      %v310 = vunpack.c.l.b16 %v291
      %v311 = vunpack.c.l.b16 %v299
      %v312 = vunpack.c.l.b16 %v298
      %v313 = vunpack.c.l.b16 %v300
      %v314 = vpack.c.b16 %v311, %v310
      %v315 = vpack.c.b16 %v313, %v312
      %318 = vst [vmem:[#allocation2] sm:$0x33] %v314
      %319 = vst [vmem:[#allocation2 + $0x8] sm:$0x33] %v315
      %v320 = vunpack.c.l.b16 %v308
      %v321 = vpack.c.b16 %v320, %v320
      %v322 = vrot.slane %v314, 6
      %v323 = vrot.slane %v315, 6
      %v324 = vrot.slane %v321, 6
      %325 = vrot.lane.b32.xlu0 %v322, 127
      %v326 = vpop.permute.xlu0 %325
      %327 = vrot.lane.b32.xlu0 %v323, 127
      %v328 = vpop.permute.xlu0 %327
      %329 = vrot.lane.b32.xlu0 %v324, 127
      %v330 = vpop.permute.xlu0 %329
      %v331 = vrot.slane %v326, 4
      %v332 = vrot.slane %v328, 4
      %v333 = vrot.slane %v330, 4
      %vm334 = vcmask 1043456
      %v335 = vsel %vm334, %v331, %v332
      %vm336 = vcmask 1039360
      %v337 = vsel %vm336, %v326, %v335
      %v338 = vsel %vm334, %v332, %v333
      %v339 = vsel %vm336, %v328, %v338
      %342 = vst [vmem:[#allocation2] sm:$0xcc] %v337
      %343 = vst [vmem:[#allocation2 + $0x8] sm:$0xcc] %v339
      %344 = vrot.lane.b32.xlu0 %v314, 126
      %v345 = vpop.permute.xlu0 %344
      %346 = vrot.lane.b32.xlu0 %v315, 126
      %v347 = vpop.permute.xlu0 %346
      %348 = vrot.lane.b32.xlu0 %v321, 126
      %v349 = vpop.permute.xlu0 %348
      %v350 = vrot.slane %v345, 4
      %v351 = vrot.slane %v347, 4
      %v352 = vrot.slane %v349, 4
      %v353 = vsel %vm334, %v350, %v351
      %vm354 = vcmask 1031168
      %v355 = vsel %vm354, %v345, %v353
      %v356 = vsel %vm334, %v351, %v352
      %v357 = vsel %vm354, %v347, %v356
      %360 = vst [vmem:[#allocation2 + $0x10] sm:$0x33] %v355
      %361 = vst [vmem:[#allocation2 + $0x18] sm:$0x33] %v357
      %362 = vrot.lane.b32.xlu0 %v322, 118
      %v363 = vpop.permute.xlu0 %362
      %364 = vrot.lane.b32.xlu0 %v323, 118
      %v365 = vpop.permute.xlu0 %364
      %366 = vrot.lane.b32.xlu0 %v324, 118
      %v367 = vpop.permute.xlu0 %366
      %v368 = vrot.slane %v363, 4
      %v369 = vrot.slane %v365, 4
      %v370 = vrot.slane %v367, 4
      %v371 = vsel %vm334, %v368, %v369
      %vm372 = vcmask 965632
      %v373 = vsel %vm372, %v363, %v371
      %v374 = vsel %vm334, %v369, %v370
      %v375 = vsel %vm372, %v365, %v374
      %378 = vst [vmem:[#allocation2 + $0x10] sm:$0xcc] %v373
      %379 = vst [vmem:[#allocation2 + $0x18] sm:$0xcc] %v375
      %380 = vrot.lane.b32.xlu0 %v314, 117
      %v381 = vpop.permute.xlu0 %380
      %382 = vrot.lane.b32.xlu0 %v315, 117
      %v383 = vpop.permute.xlu0 %382
      %384 = vrot.lane.b32.xlu0 %v321, 117
      %v385 = vpop.permute.xlu0 %384
      %v386 = vrot.slane %v381, 4
      %v387 = vrot.slane %v383, 4
      %v388 = vrot.slane %v385, 4
      %v389 = vsel %vm334, %v386, %v387
      %vm390 = vcmask 957440
      %v391 = vsel %vm390, %v381, %v389
      %v392 = vsel %vm334, %v387, %v388
      %v393 = vsel %vm390, %v383, %v392
      %396 = vst [vmem:[#allocation2 + $0x20] sm:$0x33] %v391
      %397 = vst [vmem:[#allocation2 + $0x28] sm:$0x33] %v393
      %398 = vrot.lane.b32.xlu0 %v322, 116
      %v399 = vpop.permute.xlu0 %398
      %400 = vrot.lane.b32.xlu0 %v323, 116
      %v401 = vpop.permute.xlu0 %400
      %402 = vrot.lane.b32.xlu0 %v324, 116
      %v403 = vpop.permute.xlu0 %402
      %v404 = vrot.slane %v399, 4
      %v405 = vrot.slane %v401, 4
      %v406 = vrot.slane %v403, 4
      %v407 = vsel %vm334, %v404, %v405
      %vm408 = vcmask 949248
      %v409 = vsel %vm408, %v399, %v407
      %v410 = vsel %vm334, %v405, %v406
      %v411 = vsel %vm408, %v401, %v410
      %414 = vst [vmem:[#allocation2 + $0x20] sm:$0xcc] %v409
      %415 = vst [vmem:[#allocation2 + $0x28] sm:$0xcc] %v411
      %416 = vrot.lane.b32.xlu0 %v314, 108
      %v417 = vpop.permute.xlu0 %416
      %418 = vrot.lane.b32.xlu0 %v315, 108
      %v419 = vpop.permute.xlu0 %418
      %420 = vrot.lane.b32.xlu0 %v321, 108
      %v421 = vpop.permute.xlu0 %420
      %v422 = vrot.slane %v417, 4
      %v423 = vrot.slane %v419, 4
      %v424 = vrot.slane %v421, 4
      %v425 = vsel %vm334, %v422, %v423
      %vm426 = vcmask 883712
      %v427 = vsel %vm426, %v417, %v425
      %v428 = vsel %vm334, %v423, %v424
      %v429 = vsel %vm426, %v419, %v428
      %432 = vst [vmem:[#allocation2 + $0x30] sm:$0x33] %v427
      %433 = vst [vmem:[#allocation2 + $0x38] sm:$0x33] %v429
      %434 = vrot.lane.b32.xlu0 %v322, 107
      %v435 = vpop.permute.xlu0 %434
      %436 = vrot.lane.b32.xlu0 %v323, 107
      %v437 = vpop.permute.xlu0 %436
      %438 = vrot.lane.b32.xlu0 %v324, 107
      %v439 = vpop.permute.xlu0 %438
      %v440 = vrot.slane %v435, 4
      %v441 = vrot.slane %v437, 4
      %v442 = vrot.slane %v439, 4
      %v443 = vsel %vm334, %v440, %v441
      %vm444 = vcmask 875520
      %v445 = vsel %vm444, %v435, %v443
      %v446 = vsel %vm334, %v441, %v442
      %v447 = vsel %vm444, %v437, %v446
      %450 = vst [vmem:[#allocation2 + $0x30] sm:$0xcc] %v445
      %451 = vst [vmem:[#allocation2 + $0x38] sm:$0xcc] %v447
      %452 = vrot.lane.b32.xlu0 %v314, 106
      %v453 = vpop.permute.xlu0 %452
      %454 = vrot.lane.b32.xlu0 %v315, 106
      %v455 = vpop.permute.xlu0 %454
      %456 = vrot.lane.b32.xlu0 %v321, 106
      %v457 = vpop.permute.xlu0 %456
      %v458 = vrot.slane %v453, 4
      %v459 = vrot.slane %v455, 4
      %v460 = vrot.slane %v457, 4
      %v461 = vsel %vm334, %v458, %v459
      %vm462 = vcmask 867328
      %v463 = vsel %vm462, %v453, %v461
      %v464 = vsel %vm334, %v459, %v460
      %v465 = vsel %vm462, %v455, %v464
      %468 = vst [vmem:[#allocation2 + $0x40] sm:$0x33] %v463
      %469 = vst [vmem:[#allocation2 + $0x48] sm:$0x33] %v465
      %470 = vrot.lane.b32.xlu0 %v322, 28
      %v471 = vpop.permute.xlu0 %470
      %472 = vrot.lane.b32.xlu0 %v323, 28
      %v473 = vpop.permute.xlu0 %472
      %474 = vrot.lane.b32.xlu0 %v324, 28
      %v475 = vpop.permute.xlu0 %474
      %v476 = vrot.slane %v471, 4
      %v477 = vrot.slane %v473, 4
      %v478 = vrot.slane %v475, 4
      %v479 = vsel %vm334, %v476, %v477
      %vm480 = vcmask 228352
      %v481 = vsel %vm480, %v471, %v479
      %v482 = vsel %vm334, %v477, %v478
      %v483 = vsel %vm480, %v473, %v482
      %486 = vst [vmem:[#allocation2 + $0x40] sm:$0xcc] %v481
      %487 = vst [vmem:[#allocation2 + $0x48] sm:$0xcc] %v483
      %488 = vrot.lane.b32.xlu0 %v314, 27
      %v489 = vpop.permute.xlu0 %488
      %490 = vrot.lane.b32.xlu0 %v315, 27
      %v491 = vpop.permute.xlu0 %490
      %492 = vrot.lane.b32.xlu0 %v321, 27
      %v493 = vpop.permute.xlu0 %492
      %v494 = vrot.slane %v489, 4
      %v495 = vrot.slane %v491, 4
      %v496 = vrot.slane %v493, 4
      %v497 = vsel %vm334, %v494, %v495
      %vm498 = vcmask 220160
      %v499 = vsel %vm498, %v489, %v497
      %v500 = vsel %vm334, %v495, %v496
      %v501 = vsel %vm498, %v491, %v500
      %504 = vst [vmem:[#allocation2 + $0x50] sm:$0x33] %v499
      %505 = vst [vmem:[#allocation2 + $0x58] sm:$0x33] %v501
      %506 = vrot.lane.b32.xlu0 %v322, 26
      %v507 = vpop.permute.xlu0 %506
      %508 = vrot.lane.b32.xlu0 %v323, 26
      %v509 = vpop.permute.xlu0 %508
      %510 = vrot.lane.b32.xlu0 %v324, 26
      %v511 = vpop.permute.xlu0 %510
      %v512 = vrot.slane %v507, 4
      %v513 = vrot.slane %v509, 4
      %v514 = vrot.slane %v511, 4
      %v515 = vsel %vm334, %v512, %v513
      %vm516 = vcmask 211968
      %v517 = vsel %vm516, %v507, %v515
      %v518 = vsel %vm334, %v513, %v514
      %v519 = vsel %vm516, %v509, %v518
      %522 = vst [vmem:[#allocation2 + $0x50] sm:$0xcc] %v517
      %523 = vst [vmem:[#allocation2 + $0x58] sm:$0xcc] %v519
      %524 = vrot.lane.b32.xlu0 %v314, 18
      %v525 = vpop.permute.xlu0 %524
      %526 = vrot.lane.b32.xlu0 %v315, 18
      %v527 = vpop.permute.xlu0 %526
      %528 = vrot.lane.b32.xlu0 %v321, 18
      %v529 = vpop.permute.xlu0 %528
      %v530 = vrot.slane %v525, 4
      %v531 = vrot.slane %v527, 4
      %v532 = vrot.slane %v529, 4
      %v533 = vsel %vm334, %v530, %v531
      %vm534 = vcmask 146432
      %v535 = vsel %vm534, %v525, %v533
      %v536 = vsel %vm334, %v531, %v532
      %v537 = vsel %vm534, %v527, %v536
      %540 = vst [vmem:[#allocation2 + $0x60] sm:$0x33] %v535
      %541 = vst [vmem:[#allocation2 + $0x68] sm:$0x33] %v537
      %542 = vrot.lane.b32.xlu0 %v322, 17
      %v543 = vpop.permute.xlu0 %542
      %544 = vrot.lane.b32.xlu0 %v323, 17
      %v545 = vpop.permute.xlu0 %544
      %546 = vrot.lane.b32.xlu0 %v324, 17
      %v547 = vpop.permute.xlu0 %546
      %v548 = vrot.slane %v543, 4
      %v549 = vrot.slane %v545, 4
      %v550 = vrot.slane %v547, 4
      %v551 = vsel %vm334, %v548, %v549
      %vm552 = vcmask 138240
      %v553 = vsel %vm552, %v543, %v551
      %v554 = vsel %vm334, %v549, %v550
      %v555 = vsel %vm552, %v545, %v554
      %558 = vst [vmem:[#allocation2 + $0x60] sm:$0xcc] %v553
      %559 = vst [vmem:[#allocation2 + $0x68] sm:$0xcc] %v555
      %560 = vrot.lane.b32.xlu0 %v314, 16
      %v561 = vpop.permute.xlu0 %560
      %562 = vrot.lane.b32.xlu0 %v315, 16
      %v563 = vpop.permute.xlu0 %562
      %564 = vrot.lane.b32.xlu0 %v321, 16
      %v565 = vpop.permute.xlu0 %564
      %v566 = vrot.slane %v561, 4
      %v567 = vrot.slane %v563, 4
      %v568 = vrot.slane %v565, 4
      %v569 = vsel %vm334, %v566, %v567
      %vm570 = vcmask 130048
      %v571 = vsel %vm570, %v561, %v569
      %v572 = vsel %vm334, %v567, %v568
      %v573 = vsel %vm570, %v563, %v572
      %576 = vst [vmem:[#allocation2 + $0x70] sm:$0x33] %v571
      %577 = vst [vmem:[#allocation2 + $0x78] sm:$0x33] %v573
      %578 = vrot.lane.b32.xlu0 %v322, 8
      %v579 = vpop.permute.xlu0 %578
      %580 = vrot.lane.b32.xlu0 %v323, 8
      %v581 = vpop.permute.xlu0 %580
      %582 = vrot.lane.b32.xlu0 %v324, 8
      %v583 = vpop.permute.xlu0 %582
      %v584 = vrot.slane %v579, 4
      %v585 = vrot.slane %v581, 4
      %v586 = vrot.slane %v583, 4
      %v587 = vsel %vm334, %v584, %v585
      %vm588 = vcmask 64512
      %v589 = vsel %vm588, %v579, %v587
      %v590 = vsel %vm334, %v585, %v586
      %v591 = vsel %vm588, %v581, %v590
      %594 = vst [vmem:[#allocation2 + $0x70] sm:$0xcc] %v589
      %595 = vst [vmem:[#allocation2 + $0x78] sm:$0xcc] %v591
      %596 = vrot.lane.b32.xlu0 %v314, 7
      %v597 = vpop.permute.xlu0 %596
      %598 = vrot.lane.b32.xlu0 %v315, 7
      %v599 = vpop.permute.xlu0 %598
      %600 = vrot.lane.b32.xlu0 %v321, 7
      %v601 = vpop.permute.xlu0 %600
      %v602 = vrot.slane %v597, 4
      %v603 = vrot.slane %v599, 4
      %v604 = vrot.slane %v601, 4
      %v605 = vsel %vm334, %v602, %v603
      %vm606 = vcmask 56320
      %v607 = vsel %vm606, %v597, %v605
      %v608 = vsel %vm334, %v603, %v604
      %v609 = vsel %vm606, %v599, %v608
      %612 = vst [vmem:[#allocation2 + $0x80] sm:$0x33] %v607
      %613 = vst [vmem:[#allocation2 + $0x88] sm:$0x33] %v609
      %614 = vrot.lane.b32.xlu0 %v322, 6
      %v615 = vpop.permute.xlu0 %614
      %616 = vrot.lane.b32.xlu0 %v323, 6
      %v617 = vpop.permute.xlu0 %616
      %618 = vrot.lane.b32.xlu0 %v324, 6
      %v619 = vpop.permute.xlu0 %618
      %v620 = vrot.slane %v615, 4
      %v621 = vrot.slane %v617, 4
      %v622 = vrot.slane %v619, 4
      %v623 = vsel %vm334, %v620, %v621
      %vm624 = vcmask 48128
      %v625 = vsel %vm624, %v615, %v623
      %v626 = vsel %vm334, %v621, %v622
      %v627 = vsel %vm624, %v617, %v626
      %630 = vst [vmem:[#allocation2 + $0x80] sm:$0xcc] %v625
      %631 = vst [vmem:[#allocation2 + $0x88] sm:$0xcc] %v627
      %v632 = vunpack.c.l.b16 %v309
      %v633 = vpack.c.b16 %v312, %v311
      %v634 = vpack.c.b16 %v320, %v313
      %v635 = vpack.c.b16 %v632, %v632
      %636 = vrot.lane.b32.xlu0 %v633, 56
      %v637 = vpop.permute.xlu0 %636
      %638 = vrot.lane.b32.xlu0 %v634, 56
      %v639 = vpop.permute.xlu0 %638
      %640 = vrot.lane.b32.xlu0 %v635, 56
      %v641 = vpop.permute.xlu0 %640
      %v642 = vrot.slane %v637, 4
      %v643 = vrot.slane %v639, 4
      %v644 = vrot.slane %v641, 4
      %v645 = vsel %vm334, %v642, %v643
      %vm646 = vcmask 457728
      %v647 = vsel %vm646, %v637, %v645
      %v648 = vsel %vm334, %v643, %v644
      %v649 = vsel %vm646, %v639, %v648
      %652 = vst [vmem:[#allocation2 + $0x90] sm:$0x33] %v647
      %653 = vst [vmem:[#allocation2 + $0x98] sm:$0x33] %v649
      %v654 = vrot.slane %v633, 6
      %v655 = vrot.slane %v634, 6
      %v656 = vrot.slane %v635, 6
      %657 = vrot.lane.b32.xlu0 %v654, 55
      %v658 = vpop.permute.xlu0 %657
      %659 = vrot.lane.b32.xlu0 %v655, 55
      %v660 = vpop.permute.xlu0 %659
      %661 = vrot.lane.b32.xlu0 %v656, 55
      %v662 = vpop.permute.xlu0 %661
      %v663 = vrot.slane %v658, 4
      %v664 = vrot.slane %v660, 4
      %v665 = vrot.slane %v662, 4
      %v666 = vsel %vm334, %v663, %v664
      %vm667 = vcmask 449536
      %v668 = vsel %vm667, %v658, %v666
      %v669 = vsel %vm334, %v664, %v665
      %v670 = vsel %vm667, %v660, %v669
      %673 = vst [vmem:[#allocation2 + $0x90] sm:$0xcc] %v668
      %674 = vst [vmem:[#allocation2 + $0x98] sm:$0xcc] %v670
      %675 = vrot.lane.b32.xlu0 %v633, 54
      %v676 = vpop.permute.xlu0 %675
      %677 = vrot.lane.b32.xlu0 %v634, 54
      %v678 = vpop.permute.xlu0 %677
      %679 = vrot.lane.b32.xlu0 %v635, 54
      %v680 = vpop.permute.xlu0 %679
      %v681 = vrot.slane %v676, 4
      %v682 = vrot.slane %v678, 4
      %v683 = vrot.slane %v680, 4
      %v684 = vsel %vm334, %v681, %v682
      %vm685 = vcmask 441344
      %v686 = vsel %vm685, %v676, %v684
      %v687 = vsel %vm334, %v682, %v683
      %v688 = vsel %vm685, %v678, %v687
      %691 = vst [vmem:[#allocation2 + $0xa0] sm:$0x33] %v686
      %692 = vst [vmem:[#allocation2 + $0xa8] sm:$0x33] %v688
      %693 = vrot.lane.b32.xlu0 %v654, 46
      %v694 = vpop.permute.xlu0 %693
      %695 = vrot.lane.b32.xlu0 %v655, 46
      %v696 = vpop.permute.xlu0 %695
      %697 = vrot.lane.b32.xlu0 %v656, 46
      %v698 = vpop.permute.xlu0 %697
      %v699 = vrot.slane %v694, 4
      %v700 = vrot.slane %v696, 4
      %v701 = vrot.slane %v698, 4
      %v702 = vsel %vm334, %v699, %v700
      %vm703 = vcmask 375808
      %v704 = vsel %vm703, %v694, %v702
      %v705 = vsel %vm334, %v700, %v701
      %v706 = vsel %vm703, %v696, %v705
      %709 = vst [vmem:[#allocation2 + $0xa0] sm:$0xcc] %v704
      %710 = vst [vmem:[#allocation2 + $0xa8] sm:$0xcc] %v706
      %711 = vrot.lane.b32.xlu0 %v633, 45
      %v712 = vpop.permute.xlu0 %711
      %713 = vrot.lane.b32.xlu0 %v634, 45
      %v714 = vpop.permute.xlu0 %713
      %715 = vrot.lane.b32.xlu0 %v635, 45
      %v716 = vpop.permute.xlu0 %715
      %v717 = vrot.slane %v712, 4
      %v718 = vrot.slane %v714, 4
      %v719 = vrot.slane %v716, 4
      %v720 = vsel %vm334, %v717, %v718
      %vm721 = vcmask 367616
      %v722 = vsel %vm721, %v712, %v720
      %v723 = vsel %vm334, %v718, %v719
      %v724 = vsel %vm721, %v714, %v723
      %727 = vst [vmem:[#allocation2 + $0xb0] sm:$0x33] %v722
      %728 = vst [vmem:[#allocation2 + $0xb8] sm:$0x33] %v724
      %729 = vrot.lane.b32.xlu0 %v654, 44
      %v730 = vpop.permute.xlu0 %729
      %731 = vrot.lane.b32.xlu0 %v655, 44
      %v732 = vpop.permute.xlu0 %731
      %733 = vrot.lane.b32.xlu0 %v656, 44
      %v734 = vpop.permute.xlu0 %733
      %v735 = vrot.slane %v730, 4
      %v736 = vrot.slane %v732, 4
      %v737 = vrot.slane %v734, 4
      %v738 = vsel %vm334, %v735, %v736
      %vm739 = vcmask 359424
      %v740 = vsel %vm739, %v730, %v738
      %v741 = vsel %vm334, %v736, %v737
      %v742 = vsel %vm739, %v732, %v741
      %745 = vst [vmem:[#allocation2 + $0xb0] sm:$0xcc] %v740
      %746 = vst [vmem:[#allocation2 + $0xb8] sm:$0xcc] %v742
      %747 = vrot.lane.b32.xlu0 %v633, 36
      %v748 = vpop.permute.xlu0 %747
      %749 = vrot.lane.b32.xlu0 %v634, 36
      %v750 = vpop.permute.xlu0 %749
      %751 = vrot.lane.b32.xlu0 %v635, 36
      %v752 = vpop.permute.xlu0 %751
      %v753 = vrot.slane %v748, 4
      %v754 = vrot.slane %v750, 4
      %v755 = vrot.slane %v752, 4
      %v756 = vsel %vm334, %v753, %v754
      %vm757 = vcmask 293888
      %v758 = vsel %vm757, %v748, %v756
      %v759 = vsel %vm334, %v754, %v755
      %v760 = vsel %vm757, %v750, %v759
      %763 = vst [vmem:[#allocation2 + $0xc0] sm:$0x33] %v758
      %764 = vst [vmem:[#allocation2 + $0xc8] sm:$0x33] %v760
      %765 = vrot.lane.b32.xlu0 %v654, 35
      %v766 = vpop.permute.xlu0 %765
      %767 = vrot.lane.b32.xlu0 %v655, 35
      %v768 = vpop.permute.xlu0 %767
      %769 = vrot.lane.b32.xlu0 %v656, 35
      %v770 = vpop.permute.xlu0 %769
      %v771 = vrot.slane %v766, 4
      %v772 = vrot.slane %v768, 4
      %v773 = vrot.slane %v770, 4
      %v774 = vsel %vm334, %v771, %v772
      %vm775 = vcmask 285696
      %v776 = vsel %vm775, %v766, %v774
      %v777 = vsel %vm334, %v772, %v773
      %v778 = vsel %vm775, %v768, %v777
      %781 = vst [vmem:[#allocation2 + $0xc0] sm:$0xcc] %v776
      %782 = vst [vmem:[#allocation2 + $0xc8] sm:$0xcc] %v778
      %783 = vrot.lane.b32.xlu0 %v633, 34
      %v784 = vpop.permute.xlu0 %783
      %785 = vrot.lane.b32.xlu0 %v634, 34
      %v786 = vpop.permute.xlu0 %785
      %787 = vrot.lane.b32.xlu0 %v635, 34
      %v788 = vpop.permute.xlu0 %787
      %v789 = vrot.slane %v784, 4
      %v790 = vrot.slane %v786, 4
      %v791 = vrot.slane %v788, 4
      %v792 = vsel %vm334, %v789, %v790
      %vm793 = vcmask 277504
      %v794 = vsel %vm793, %v784, %v792
      %v795 = vsel %vm334, %v790, %v791
      %v796 = vsel %vm793, %v786, %v795
      %799 = vst [vmem:[#allocation2 + $0xd0] sm:$0x33] %v794
      %800 = vst [vmem:[#allocation2 + $0xd8] sm:$0x33] %v796
      %801 = vst [vmem:[#allocation2 + $0xd0] sm:$0xcc] 0
      %802 = vst [vmem:[#allocation2 + $0xd8] sm:$0xcc] 0
      %803 = vst [vmem:[#allocation2 + $0xe0] sm:$0xff] 0
      %804 = vst [vmem:[#allocation2 + $0xe8] sm:$0xff] 0
      %805 = vst [vmem:[#allocation2 + $0xf0] sm:$0xff] 0
      %806 = vst [vmem:[#allocation2 + $0xf8] sm:$0xff] 0
      %v807 = vld [vmem:[%s2] sm:$0xf]
      %v808 = vld [vmem:[#allocation2] sm:$0xff]
      %v809 = vld [vmem:[#allocation2 + $0x8] sm:$0xff]
      %v810 = vld [vmem:[#allocation2 + $0x10] sm:$0xff]
      %v811 = vld [vmem:[#allocation2 + $0x18] sm:$0xff]
      %v812 = vld [vmem:[#allocation2 + $0x20] sm:$0xff]
      %v813 = vld [vmem:[#allocation2 + $0x28] sm:$0xff]
      %v814 = vld [vmem:[#allocation2 + $0x30] sm:$0xff]
      %v815 = vld [vmem:[#allocation2 + $0x38] sm:$0xff]
      %v816 = vld [vmem:[#allocation2 + $0x40] sm:$0xff]
      %v817 = vld [vmem:[#allocation2 + $0x48] sm:$0xff]
      %v818 = vld [vmem:[#allocation2 + $0x50] sm:$0xff]
      %v819 = vld [vmem:[#allocation2 + $0x58] sm:$0xff]
      %v820 = vld [vmem:[#allocation2 + $0x60] sm:$0xff]
      %v821 = vld [vmem:[#allocation2 + $0x68] sm:$0xff]
      %v822 = vld [vmem:[#allocation2 + $0x70] sm:$0xff]
      %v823 = vld [vmem:[#allocation2 + $0x78] sm:$0xff]
      %v824 = vld [vmem:[#allocation2 + $0x80] sm:$0xff]
      %v825 = vld [vmem:[#allocation2 + $0x88] sm:$0xff]
      %v826 = vld [vmem:[#allocation2 + $0x90] sm:$0xff]
      %v827 = vld [vmem:[#allocation2 + $0x98] sm:$0xff]
      %v828 = vld [vmem:[#allocation2 + $0xa0] sm:$0xff]
      %v829 = vld [vmem:[#allocation2 + $0xa8] sm:$0xff]
      %v830 = vld [vmem:[#allocation2 + $0xb0] sm:$0xff]
      %v831 = vld [vmem:[#allocation2 + $0xb8] sm:$0xff]
      %v832 = vld [vmem:[#allocation2 + $0xc0] sm:$0xff]
      %v833 = vld [vmem:[#allocation2 + $0xc8] sm:$0xff]
      %v834 = vld [vmem:[#allocation2 + $0xd0] sm:$0xff]
      %v835 = vld [vmem:[#allocation2 + $0xd8] sm:$0xff]
      %v836 = vld [vmem:[#allocation2 + $0xe0] sm:$0xff]
      %v837 = vld [vmem:[#allocation2 + $0xe8] sm:$0xff]
      %v838 = vld [vmem:[#allocation2 + $0xf0] sm:$0xff]
      %v839 = vld [vmem:[#allocation2 + $0xf8] sm:$0xff]
      %v840 = vld [vmem:[%s3] sm:$0xff]
      %842 = vset.pattern.permute.xlu0 0
      %843 = vperm.xlu0 %842, %v840
      %v844 = vpop.permute.xlu0 %843
      %v878 = vunpack.c.l.b16 %v808
      %v879 = vunpack.c.h.b16 %v808
      %v880 = vunpack.c.l.b16 %v809
      %v881 = vunpack.c.h.b16 %v809
      %v882 = vunpack.c.l.b16 %v810
      %v883 = vunpack.c.h.b16 %v810
      %v884 = vunpack.c.l.b16 %v811
      %v885 = vunpack.c.h.b16 %v811
      %v886 = vunpack.c.l.b16 %v812
      %v887 = vunpack.c.h.b16 %v812
      %v888 = vunpack.c.l.b16 %v813
      %v889 = vunpack.c.h.b16 %v813
      %v890 = vunpack.c.l.b16 %v814
      %v891 = vunpack.c.h.b16 %v814
      %v892 = vunpack.c.l.b16 %v815
      %v893 = vunpack.c.h.b16 %v815
      %v894 = vunpack.c.l.b16 %v816
      %v895 = vunpack.c.h.b16 %v816
      %v896 = vunpack.c.l.b16 %v817
      %v897 = vunpack.c.h.b16 %v817
      %v898 = vunpack.c.l.b16 %v818
      %v899 = vunpack.c.h.b16 %v818
      %v900 = vunpack.c.l.b16 %v819
      %v901 = vunpack.c.h.b16 %v819
      %v902 = vunpack.c.l.b16 %v820
      %v903 = vunpack.c.h.b16 %v820
      %v904 = vunpack.c.l.b16 %v821
      %v905 = vunpack.c.h.b16 %v821
      %v906 = vunpack.c.l.b16 %v822
      %v907 = vunpack.c.h.b16 %v822
      %v908 = vunpack.c.l.b16 %v823
      %v909 = vunpack.c.h.b16 %v823
      %v910 = vunpack.c.l.b16 %v824
      %v911 = vunpack.c.h.b16 %v824
      %v912 = vunpack.c.l.b16 %v825
      %v913 = vunpack.c.h.b16 %v825
      %v914 = vunpack.c.l.b16 %v826
      %v915 = vunpack.c.h.b16 %v826
      %v916 = vunpack.c.l.b16 %v827
      %v917 = vunpack.c.h.b16 %v827
      %v918 = vunpack.c.l.b16 %v828
      %v919 = vunpack.c.h.b16 %v828
      %v920 = vunpack.c.l.b16 %v829
      %v921 = vunpack.c.h.b16 %v829
      %v922 = vunpack.c.l.b16 %v830
      %v923 = vunpack.c.h.b16 %v830
      %v924 = vunpack.c.l.b16 %v831
      %v925 = vunpack.c.h.b16 %v831
      %v926 = vunpack.c.l.b16 %v832
      %v927 = vunpack.c.h.b16 %v832
      %v928 = vunpack.c.l.b16 %v833
      %v929 = vunpack.c.h.b16 %v833
      %v930 = vunpack.c.l.b16 %v834
      %v931 = vunpack.c.h.b16 %v834
      %v932 = vunpack.c.l.b16 %v835
      %v933 = vunpack.c.h.b16 %v835
      %v934 = vunpack.c.l.b16 %v836
      %v935 = vunpack.c.h.b16 %v836
      %v936 = vunpack.c.l.b16 %v837
      %v937 = vunpack.c.h.b16 %v837
      %v938 = vunpack.c.l.b16 %v838
      %v939 = vunpack.c.h.b16 %v838
      %v940 = vunpack.c.l.b16 %v839
      %v941 = vunpack.c.h.b16 %v839
      %v942 = vpack.c.b16 %v882, %v878
      %v943 = vpack.c.b16 %v883, %v879
      %v944 = vpack.c.b16 %v884, %v880
      %v945 = vpack.c.b16 %v885, %v881
      %v946 = vpack.c.b16 %v890, %v886
      %v947 = vpack.c.b16 %v891, %v887
      %v948 = vpack.c.b16 %v892, %v888
      %v949 = vpack.c.b16 %v893, %v889
      %v950 = vpack.c.b16 %v898, %v894
      %v951 = vpack.c.b16 %v899, %v895
      %v952 = vpack.c.b16 %v900, %v896
      %v953 = vpack.c.b16 %v901, %v897
      %v954 = vpack.c.b16 %v906, %v902
      %v955 = vpack.c.b16 %v907, %v903
      %v956 = vpack.c.b16 %v908, %v904
      %v957 = vpack.c.b16 %v909, %v905
      %v958 = vpack.c.b16 %v914, %v910
      %v959 = vpack.c.b16 %v915, %v911
      %v960 = vpack.c.b16 %v916, %v912
      %v961 = vpack.c.b16 %v917, %v913
      %v962 = vpack.c.b16 %v922, %v918
      %v963 = vpack.c.b16 %v923, %v919
      %v964 = vpack.c.b16 %v924, %v920
      %v965 = vpack.c.b16 %v925, %v921
      %v966 = vpack.c.b16 %v930, %v926
      %v967 = vpack.c.b16 %v931, %v927
      %v968 = vpack.c.b16 %v932, %v928
      %v969 = vpack.c.b16 %v933, %v929
      %v970 = vpack.c.b16 %v938, %v934
      %v971 = vpack.c.b16 %v939, %v935
      %v972 = vpack.c.b16 %v940, %v936
      %v973 = vpack.c.b16 %v941, %v937
      %1006 = vmatprep.subr.bf16.mxu0 %v971
      %1007 = vmatpush1.bf16.msra.mxu0 %v970
      %1008 = vmatprep.subr.bf16.mxu0 %v967
      %1009 = vmatpush1.bf16.msra.mxu0 %v966
      %1010 = vmatprep.subr.bf16.mxu0 %v963
      %1011 = vmatpush1.bf16.msra.mxu0 %v962
      %1012 = vmatprep.subr.bf16.mxu0 %v959
      %1013 = vmatpush1.bf16.msra.mxu0 %v958
      %1014 = vmatprep.subr.bf16.mxu0 %v955
      %1015 = vmatpush1.bf16.msra.mxu0 %v954
      %1016 = vmatprep.subr.bf16.mxu0 %v951
      %1017 = vmatpush1.bf16.msra.mxu0 %v950
      %1018 = vmatprep.subr.bf16.mxu0 %v947
      %1019 = vmatpush1.bf16.msra.mxu0 %v946
      %1020 = vmatprep.subr.bf16.mxu0 %v943
      %1021 = vmatpush1.bf16.msra.mxu0 %v942
      %1022 = vmatprep.subr.bf16.mxu0 0
      %1023 = vmatpush2.bf16.msra.mxu0 0
      %1024 = vmatprep.subr.bf16.mxu0 0
      %1025 = vmatpush2.bf16.msra.mxu0 0
      %1026 = vmatprep.subr.bf16.mxu0 0
      %1027 = vmatpush2.bf16.msra.mxu0 0
      %1028 = vmatprep.subr.bf16.mxu0 0
      %1029 = vmatpush2.bf16.msra.mxu0 0
      %1030 = vmatprep.subr.bf16.mxu0 0
      %1031 = vmatpush2.bf16.msra.mxu0 0
      %1032 = vmatprep.subr.bf16.mxu0 0
      %1033 = vmatpush2.bf16.msra.mxu0 0
      %1034 = vmatprep.subr.bf16.mxu0 0
      %1035 = vmatpush2.bf16.msra.mxu0 0
      %1036 = vmatprep.subr.bf16.mxu0 0
      %1037 = vmatpush2.bf16.msra.mxu0 0
      %1038 = vmatprep.mubr.bf16.mxu0 0
      %1039 = vmatmul.mubr.bf16.gmra.mxu0 %v807
      %v1040 = vpop.f32.mrf.mxu0
      %v1041 = vadd.f32 %v844, %v1040
      %v1042 = vpop.f32.mrf.mxu0
      %v1043 = vadd.f32 %v844, %v1042
      %v1044 = vpop.f32.mrf.mxu0
      %v1045 = vpop.f32.mrf.mxu0
      %1046 = vdwg.mxu0
      %1047 = vmatprep.subr.bf16.mxu0 %v973
      %1048 = vmatpush1.bf16.msra.mxu0 %v972
      %1049 = vmatprep.subr.bf16.mxu0 %v969
      %1050 = vmatpush1.bf16.msra.mxu0 %v968
      %1051 = vmatprep.subr.bf16.mxu0 %v965
      %1052 = vmatpush1.bf16.msra.mxu0 %v964
      %1053 = vmatprep.subr.bf16.mxu0 %v961
      %1054 = vmatpush1.bf16.msra.mxu0 %v960
      %1055 = vmatprep.subr.bf16.mxu0 %v957
      %1056 = vmatpush1.bf16.msra.mxu0 %v956
      %1057 = vmatprep.subr.bf16.mxu0 %v953
      %1058 = vmatpush1.bf16.msra.mxu0 %v952
      %1059 = vmatprep.subr.bf16.mxu0 %v949
      %1060 = vmatpush1.bf16.msra.mxu0 %v948
      %1061 = vmatprep.subr.bf16.mxu0 %v945
      %1062 = vmatpush1.bf16.msra.mxu0 %v944
      %1063 = vmatprep.subr.bf16.mxu0 0
      %1064 = vmatpush2.bf16.msra.mxu0 0
      %1065 = vmatprep.subr.bf16.mxu0 0
      %1066 = vmatpush2.bf16.msra.mxu0 0
      %1067 = vmatprep.subr.bf16.mxu0 0
      %1068 = vmatpush2.bf16.msra.mxu0 0
      %1069 = vmatprep.subr.bf16.mxu0 0
      %1070 = vmatpush2.bf16.msra.mxu0 0
      %1071 = vmatprep.subr.bf16.mxu0 0
      %1072 = vmatpush2.bf16.msra.mxu0 0
      %1073 = vmatprep.subr.bf16.mxu0 0
      %1074 = vmatpush2.bf16.msra.mxu0 0
      %1075 = vmatprep.subr.bf16.mxu0 0
      %1076 = vmatpush2.bf16.msra.mxu0 0
      %1077 = vmatprep.subr.bf16.mxu0 0
      %1078 = vmatpush2.bf16.msra.mxu0 0
      %1079 = vmatprep.mubr.bf16.mxu0 0
      %1080 = vmatmul.mubr.bf16.gmra.mxu0 %v807
      %v1081 = vpop.f32.mrf.mxu0
      %v1082 = vadd.f32 %v844, %v1081
      %v1083 = vpop.f32.mrf.mxu0
      %v1084 = vadd.f32 %v844, %v1083
      %v1085 = vpop.f32.mrf.mxu0
      %v1086 = vpop.f32.mrf.mxu0
      %1087 = vdwg.mxu0
      %1088 = vst [vmem:[%s278] sm:$0xff] %v1041
      %1089 = vst [vmem:[%s278 + $0x8] sm:$0xff] %v1043
      %1090 = vst [vmem:[%s278 + $0x10] sm:$0xff] %v1082
      %1091 = vst [vmem:[%s278 + $0x18] sm:$0xff] %v1084
      %s1092 = smul.u32 4, %s20
      %p1093 = scmp.lt.s32.totalorder %s19, 1
      %s1094 = scalar_select %p1093, %s19, 1
      %p1095 = scmp.lt.s32.totalorder %s1092, 7
      %s1096 = scalar_select %p1095, %s1092, 7
      %s1097 = smul.addr %s1094, 8
      %s1098 = sadd.s32 %s1096, %s1097
      %s1099 = smul.addr %s1098, 8
      %s1100 = scalar_lea.vmem %s4, %s1099
      // Predicated region
      $region37: #{same_pad_conv3d.1} parent=35 // pred_check
        %p1101 = pneg %p147
      $region38: #{same_pad_conv3d.1} parent=35 // pred_check_branch
        %1103 = sbr.rel (%p1101) target = $region40
      $region39: #{same_pad_conv3d.1} parent=35 // pred_region
        %s1104 = smul.u32 4, %s20
      $region40: #{same_pad_conv3d.1} parent=35 // pred_fallthru
        _
    $region36: #{same_pad_conv3d.1} parent=5 // pred_fallthru
      _
    %p1105 = scmp.le.s32.totalorder 2, %s10
    // Predicated region
    $region41: #{same_pad_conv3d.1} parent=5 // pred_check
      %p1106 = pneg %p1105
    $region42: #{same_pad_conv3d.1} parent=5 // pred_check_branch
      %1108 = sbr.rel (%p1106) target = $region44
    $region43: #{same_pad_conv3d.1} parent=5 // pred_region
      %s1109 = ssub.s32 %s10, 2
      // Predicated region
      $region45: #{same_pad_conv3d.1} parent=43 // pred_check
        %p1110 = pneg %p153
      $region46: #{same_pad_conv3d.1} parent=43 // pred_check_branch
        %1112 = sbr.rel (%p1110) target = $region48
      $region47: #{same_pad_conv3d.1} parent=43 // pred_region
        %s1113 = smul.u32 4, %s22
        %p1114 = scmp.lt.s32.totalorder %s21, 1
        %s1115 = scalar_select %p1114, %s21, 1
        %p1116 = scmp.lt.s32.totalorder %s1113, 7
        %s1117 = scalar_select %p1116, %s1113, 7
        %s1118 = smul.addr %s1115, 8
        %s1119 = sadd.s32 %s1117, %s1118
        %s1120 = smul.addr %s1119, 8
        %s1121 = scalar_lea.vmem %s4, %s1120
      $region48: #{same_pad_conv3d.1} parent=43 // pred_fallthru
        _
    $region44: #{same_pad_conv3d.1} parent=5 // pred_fallthru
      _
  $region6: #{same_pad_conv3d.1} parent=0 // loop_footer
    %s14 = sadd.s32 1, %s10
  $region7: #{same_pad_conv3d.1} parent=0 // loop_footer_branch
    %9 = sbr.rel target = $region3
  $region8: #{same_pad_conv3d.1} parent=0 // loop_exit
    _

</llo_original>
